<compile_context>
chip_gen: v5e
topology: v5e:2x2
jax: 0.10.0
libtpu: 0.0.40
codegen_flags: <defaults>
</compile_context>

<pallas_src>
import functools

import jax
import jax.numpy as jnp
from jax.experimental import pallas as pl
from jax.experimental.pallas import tpu as pltpu


def _mlp_kernel(xi_ref, xj_ref, w1a_ref, w1b_ref, b1_ref, w2_ref, b2_ref,
                w3_ref, b3_ref, o_ref):
    # Layer 1 (fused concat): (TM, C)@(C, H) + (TM, C)@(C, H) + (1, H) -> ReLU
    h = jnp.dot(xi_ref[...], w1a_ref[...], preferred_element_type=jnp.float32)
    h = h + jnp.dot(xj_ref[...], w1b_ref[...], preferred_element_type=jnp.float32)
    h = jnp.maximum(h + b1_ref[...], 0.0)
    # Layer 2: (TM, H)@(H, H) + (1, H) -> ReLU   (bf16 feed, f32 accumulate)
    h = jnp.dot(h.astype(jnp.bfloat16), w2_ref[...],
                preferred_element_type=jnp.float32)
    h = jnp.maximum(h + b2_ref[...], 0.0)
    # Output layer as a lane reduction (avoids a 1-column MXU matmul):
    # (TM, H) * (1, H) -> sum over lanes -> (TM, 1), + scalar bias from SMEM.
    logit = jnp.sum(h * w3_ref[...], axis=-1, keepdims=True) + b3_ref[0, 0]
    o_ref[...] = jax.nn.sigmoid(logit)


def _round_up(x, m):
    return (x + m - 1) // m * m


@functools.partial(jax.jit, static_argnames=("tile_m",))
def link_predictor_forward(x_i, x_j, params, tile_m=512):
    """Pallas implementation of LinkPredictor.forward (eval mode)."""
    w1, b1, w2, b2, w3, b3 = params
    n, c = x_i.shape
    hdim = w1.shape[1]

    # Effective row tile: cap at the (padded) batch and keep >= 2 grid steps when
    # possible so both v7x TensorCores get work under dimension_semantics=("parallel",).
    tile = min(tile_m, _round_up(n, 8))
    if _round_up(n, tile) // tile < 2 and tile > 8:
        tile = max(8, _round_up(pl.cdiv(n, 2), 8))
    n_pad = _round_up(n, tile)

    # Pad the batch in the wrapper instead of constraining callers; slice output below.
    if n_pad != n:
        pad = ((0, n_pad - n), (0, 0))
        x_i = jnp.pad(x_i, pad)
        x_j = jnp.pad(x_j, pad)

    # bf16 streams/weights, f32 accumulation inside the kernel.
    x_i_b = x_i.astype(jnp.bfloat16)
    x_j_b = x_j.astype(jnp.bfloat16)
    w1a = w1[:c].astype(jnp.bfloat16)            # W1 half applied to x_i
    w1b = w1[c:].astype(jnp.bfloat16)            # W1 half applied to x_j
    w2b = w2.astype(jnp.bfloat16)
    b1f = b1.reshape(1, hdim).astype(jnp.float32)
    b2f = b2.reshape(1, hdim).astype(jnp.float32)
    w3r = w3.reshape(1, hdim).astype(jnp.float32)  # row vector for the lane reduction
    b3s = b3.reshape(1, 1).astype(jnp.float32)     # scalar bias, lives in SMEM

    grid = (n_pad // tile,)
    out = pl.pallas_call(
        _mlp_kernel,
        out_shape=jax.ShapeDtypeStruct((n_pad, 1), jnp.float32),
        grid_spec=pltpu.PrefetchScalarGridSpec(
            num_scalar_prefetch=0,
            grid=grid,
            in_specs=[
                pl.BlockSpec((tile, c), lambda i: (i, 0)),     # x_i tile
                pl.BlockSpec((tile, c), lambda i: (i, 0)),     # x_j tile
                pl.BlockSpec((c, hdim), lambda i: (0, 0)),     # W1[:C]
                pl.BlockSpec((c, hdim), lambda i: (0, 0)),     # W1[C:]
                pl.BlockSpec((1, hdim), lambda i: (0, 0)),     # b1
                pl.BlockSpec((hdim, hdim), lambda i: (0, 0)),  # W2
                pl.BlockSpec((1, hdim), lambda i: (0, 0)),     # b2
                pl.BlockSpec((1, hdim), lambda i: (0, 0)),     # w3 row
                pl.BlockSpec(memory_space=pltpu.MemorySpace.SMEM),  # b3 scalar
            ],
            out_specs=pl.BlockSpec((tile, 1), lambda i: (i, 0)),
        ),
        compiler_params=pltpu.CompilerParams(
            dimension_semantics=("parallel",)),
    )(x_i_b, x_j_b, w1a, w1b, b1f, w2b, b2f, w3r, b3s)
    return out[:n]


def init_params(key, in_channels, hidden_channels):
    """Deterministic synthetic parameters, shapes matching LinkPredictor.__init__."""
    d_in = in_channels * 2
    k = jax.random.split(key, 6)

    def lin(kw, kb, fan_in, fan_out):
        bound = 1.0 / jnp.sqrt(fan_in)
        w = jax.random.uniform(kw, (fan_in, fan_out), jnp.float32, -bound, bound)
        b = jax.random.uniform(kb, (1, fan_out), jnp.float32, -bound, bound)
        return w, b

    w1, b1 = lin(k[0], k[1], d_in, hidden_channels)
    w2, b2 = lin(k[2], k[3], hidden_channels, hidden_channels)
    w3, b3 = lin(k[4], k[5], hidden_channels, 1)
    return (w1, b1, w2, b2, w3, b3)


def _reference(x_i, x_j, params):
    w1, b1, w2, b2, w3, b3 = params
    x = jnp.concatenate([x_i, x_j], axis=-1)
    x = jax.nn.relu(x @ w1 + b1)
    x = jax.nn.relu(x @ w2 + b2)
    return jax.nn.sigmoid(x @ w3 + b3)


if __name__ == "__main__":
    key = jax.random.PRNGKey(0)
    in_channels = 16
    hidden_channels = 32   # module default is 64; small shape chosen for the demo
    num_edges = 64

    kp, ki, kj = jax.random.split(key, 3)
    params = init_params(kp, in_channels, hidden_channels)
    x_i = jax.random.normal(ki, (num_edges, in_channels), jnp.float32)
    x_j = jax.random.normal(kj, (num_edges, in_channels), jnp.float32)

    out = link_predictor_forward(x_i, x_j, params)
    jax.block_until_ready(out)

    ref = _reference(x_i, x_j, params)
    assert out.shape == (num_edges, 1)
    # bf16 streams with f32 accumulation: compare against f32 reference with a loose tol.
    assert jnp.allclose(out, ref, atol=2e-2, rtol=0.0), float(jnp.max(jnp.abs(out - ref)))
    print("KERNEL_OK")
</pallas_src>

<mosaic_0001>
module attributes {stable_mosaic.version = 11 : i64} {
  func.func @_mlp_kernel(%arg0: i32, %arg1: memref<32x16xbf16, #tpu.memory_space<vmem>>, %arg2: memref<32x16xbf16, #tpu.memory_space<vmem>>, %arg3: memref<16x32xbf16, #tpu.memory_space<vmem>>, %arg4: memref<16x32xbf16, #tpu.memory_space<vmem>>, %arg5: memref<1x32xf32, #tpu.memory_space<vmem>>, %arg6: memref<32x32xbf16, #tpu.memory_space<vmem>>, %arg7: memref<1x32xf32, #tpu.memory_space<vmem>>, %arg8: memref<1x32xf32, #tpu.memory_space<vmem>>, %arg9: memref<1x1xf32, #tpu.memory_space<smem>>, %arg10: memref<32x1xf32, #tpu.memory_space<vmem>>) attributes {dimension_semantics = [#tpu.dimension_semantics<parallel>], iteration_bounds = array<i64: 2>, scalar_prefetch = 0 : i64, scratch_operands = 0 : i64, tpu.core_type = #tpu.core_type<tc>, window_params = [{transform_indices = @transform_0, window_bounds = array<i64: 32, 16>}, {transform_indices = @transform_1, window_bounds = array<i64: 32, 16>}, {pipeline_mode = #tpu.pipeline_mode<synchronous>, transform_indices = @transform_2, window_bounds = array<i64: 16, 32>}, {pipeline_mode = #tpu.pipeline_mode<synchronous>, transform_indices = @transform_3, window_bounds = array<i64: 16, 32>}, {pipeline_mode = #tpu.pipeline_mode<synchronous>, transform_indices = @transform_4, window_bounds = array<i64: 1, 32>}, {pipeline_mode = #tpu.pipeline_mode<synchronous>, transform_indices = @transform_5, window_bounds = array<i64: 32, 32>}, {pipeline_mode = #tpu.pipeline_mode<synchronous>, transform_indices = @transform_6, window_bounds = array<i64: 1, 32>}, {pipeline_mode = #tpu.pipeline_mode<synchronous>, transform_indices = @transform_7, window_bounds = array<i64: 1, 32>}, {transform_indices = @transform_8, window_bounds = array<i64: 1, 1>}, {transform_indices = @transform_9, window_bounds = array<i64: 32, 1>}]} {
    %c0 = arith.constant 0 : index
    %c0_0 = arith.constant 0 : index
    %0 = vector.load %arg1[%c0, %c0_0] : memref<32x16xbf16, #tpu.memory_space<vmem>>, vector<32x16xbf16>
    %c0_1 = arith.constant 0 : index
    %c0_2 = arith.constant 0 : index
    %1 = vector.load %arg3[%c0_1, %c0_2] : memref<16x32xbf16, #tpu.memory_space<vmem>>, vector<16x32xbf16>
    %cst = arith.constant dense<0.000000e+00> : vector<32x32xf32>
    %2 = tpu.matmul %0, %1, %cst {dimension_numbers = #tpu.dot_dimension_numbers<[1], [0], [0], [1], [0, 0, 1, 1], [], []>} : vector<32x16xbf16>, vector<16x32xbf16>, vector<32x32xf32> -> vector<32x32xf32>
    %c0_3 = arith.constant 0 : index
    %c0_4 = arith.constant 0 : index
    %3 = vector.load %arg2[%c0_3, %c0_4] : memref<32x16xbf16, #tpu.memory_space<vmem>>, vector<32x16xbf16>
    %c0_5 = arith.constant 0 : index
    %c0_6 = arith.constant 0 : index
    %4 = vector.load %arg4[%c0_5, %c0_6] : memref<16x32xbf16, #tpu.memory_space<vmem>>, vector<16x32xbf16>
    %cst_7 = arith.constant dense<0.000000e+00> : vector<32x32xf32>
    %5 = tpu.matmul %3, %4, %cst_7 {dimension_numbers = #tpu.dot_dimension_numbers<[1], [0], [0], [1], [0, 0, 1, 1], [], []>} : vector<32x16xbf16>, vector<16x32xbf16>, vector<32x32xf32> -> vector<32x32xf32>
    %6 = arith.addf %2, %5 : vector<32x32xf32>
    %c0_8 = arith.constant 0 : index
    %c0_9 = arith.constant 0 : index
    %7 = vector.load %arg5[%c0_8, %c0_9] : memref<1x32xf32, #tpu.memory_space<vmem>>, vector<1x32xf32>
    %8 = vector.broadcast %7 : vector<1x32xf32> to vector<32x32xf32>
    %9 = arith.addf %6, %8 : vector<32x32xf32>
    %cst_10 = arith.constant 0.000000e+00 : f32
    %10 = vector.broadcast %cst_10 : f32 to vector<32x32xf32>
    %11 = arith.maximumf %9, %10 : vector<32x32xf32>
    %12 = arith.truncf %11 : vector<32x32xf32> to vector<32x32xbf16>
    %c0_11 = arith.constant 0 : index
    %c0_12 = arith.constant 0 : index
    %13 = vector.load %arg6[%c0_11, %c0_12] : memref<32x32xbf16, #tpu.memory_space<vmem>>, vector<32x32xbf16>
    %cst_13 = arith.constant dense<0.000000e+00> : vector<32x32xf32>
    %14 = tpu.matmul %12, %13, %cst_13 {dimension_numbers = #tpu.dot_dimension_numbers<[1], [0], [0], [1], [0, 0, 1, 1], [], []>} : vector<32x32xbf16>, vector<32x32xbf16>, vector<32x32xf32> -> vector<32x32xf32>
    %c0_14 = arith.constant 0 : index
    %c0_15 = arith.constant 0 : index
    %15 = vector.load %arg7[%c0_14, %c0_15] : memref<1x32xf32, #tpu.memory_space<vmem>>, vector<1x32xf32>
    %16 = vector.broadcast %15 : vector<1x32xf32> to vector<32x32xf32>
    %17 = arith.addf %14, %16 : vector<32x32xf32>
    %cst_16 = arith.constant 0.000000e+00 : f32
    %18 = vector.broadcast %cst_16 : f32 to vector<32x32xf32>
    %19 = arith.maximumf %17, %18 : vector<32x32xf32>
    %c0_17 = arith.constant 0 : index
    %c0_18 = arith.constant 0 : index
    %20 = vector.load %arg8[%c0_17, %c0_18] : memref<1x32xf32, #tpu.memory_space<vmem>>, vector<1x32xf32>
    %21 = vector.broadcast %20 : vector<1x32xf32> to vector<32x32xf32>
    %22 = arith.mulf %19, %21 : vector<32x32xf32>
    %cst_19 = arith.constant dense<0.000000e+00> : vector<32xf32>
    %23 = vector.multi_reduction <add>, %22, %cst_19 [1] : vector<32x32xf32> to vector<32xf32>
    %24 = vector.shape_cast %23 : vector<32xf32> to vector<32x1xf32>
    %c0_20 = arith.constant 0 : index
    %c0_21 = arith.constant 0 : index
    %25 = memref.load %arg9[%c0_20, %c0_21] : memref<1x1xf32, #tpu.memory_space<smem>>
    %26 = vector.broadcast %25 : f32 to vector<32x1xf32>
    %27 = arith.addf %24, %26 : vector<32x1xf32>
    %28 = arith.negf %27 : vector<32x1xf32>
    %29 = math.exp %28 : vector<32x1xf32>
    %cst_22 = arith.constant 1.000000e+00 : f32
    %30 = vector.broadcast %cst_22 : f32 to vector<32x1xf32>
    %31 = arith.addf %30, %29 : vector<32x1xf32>
    %32 = arith.divf %30, %31 : vector<32x1xf32>
    %c0_23 = arith.constant 0 : index
    %c0_24 = arith.constant 0 : index
    %33 = vector.load %arg10[%c0_23, %c0_24] : memref<32x1xf32, #tpu.memory_space<vmem>>, vector<32x1xf32>
    tpu.vector_store %arg10[%c0_23, %c0_24], %32 {strides = array<i32>} : memref<32x1xf32, #tpu.memory_space<vmem>>, vector<32x1xf32>,
    return
  }
  func.func @transform_0(%arg0: i32) -> (i32, i32) {
    %c0_i32 = arith.constant 0 : i32
    %c0_i32_0 = arith.constant 0 : i32
    return %arg0, %c0_i32 : i32, i32
  }
  func.func @transform_1(%arg0: i32) -> (i32, i32) {
    %c0_i32 = arith.constant 0 : i32
    %c0_i32_0 = arith.constant 0 : i32
    return %arg0, %c0_i32 : i32, i32
  }
  func.func @transform_2(%arg0: i32) -> (i32, i32) {
    %c0_i32 = arith.constant 0 : i32
    %c0_i32_0 = arith.constant 0 : i32
    %c0_i32_1 = arith.constant 0 : i32
    return %c0_i32, %c0_i32_0 : i32, i32
  }
  func.func @transform_3(%arg0: i32) -> (i32, i32) {
    %c0_i32 = arith.constant 0 : i32
    %c0_i32_0 = arith.constant 0 : i32
    %c0_i32_1 = arith.constant 0 : i32
    return %c0_i32, %c0_i32_0 : i32, i32
  }
  func.func @transform_4(%arg0: i32) -> (i32, i32) {
    %c0_i32 = arith.constant 0 : i32
    %c0_i32_0 = arith.constant 0 : i32
    %c0_i32_1 = arith.constant 0 : i32
    return %c0_i32, %c0_i32_0 : i32, i32
  }
  func.func @transform_5(%arg0: i32) -> (i32, i32) {
    %c0_i32 = arith.constant 0 : i32
    %c0_i32_0 = arith.constant 0 : i32
    %c0_i32_1 = arith.constant 0 : i32
    return %c0_i32, %c0_i32_0 : i32, i32
  }
  func.func @transform_6(%arg0: i32) -> (i32, i32) {
    %c0_i32 = arith.constant 0 : i32
    %c0_i32_0 = arith.constant 0 : i32
    %c0_i32_1 = arith.constant 0 : i32
    return %c0_i32, %c0_i32_0 : i32, i32
  }
  func.func @transform_7(%arg0: i32) -> (i32, i32) {
    %c0_i32 = arith.constant 0 : i32
    %c0_i32_0 = arith.constant 0 : i32
    %c0_i32_1 = arith.constant 0 : i32
    return %c0_i32, %c0_i32_0 : i32, i32
  }
  func.func @transform_8(%arg0: i32) -> (i32, i32) {
    %c0_i32 = arith.constant 0 : i32
    %c0_i32_0 = arith.constant 0 : i32
    %c0_i32_1 = arith.constant 0 : i32
    return %c0_i32, %c0_i32_0 : i32, i32
  }
  func.func @transform_9(%arg0: i32) -> (i32, i32) {
    %c0_i32 = arith.constant 0 : i32
    %c0_i32_0 = arith.constant 0 : i32
    return %arg0, %c0_i32 : i32, i32
  }
}

</mosaic_0001>

<llo_original>
// kernel: link_predictor_forward.1
$region0: #{link_predictor_forward.1}
  #allocation0 [shape = 'u32[]', space=smem, size = 0x4, offset = 0x4, fixed_abs, tag = 'smem constant byte address 0x4 - core index']
  #allocation1 [shape = 'u32[72,128]{1,0:T(1,128)}', space=vmem, size = 0x9000, scoped, tag = 'internal scratch']
  #allocation2 [shape = 'f32[1,1]{1,0:T(1,128)S(6)}', space=smem, size = 0x200, scoped, tag = 'scoped memory for link_predictor_forward.1']
  %s0 = inlined_call_operand.vmem [shape: bf16[64,16], index: 0, kind: input, shape index: {}]
  %s1 = inlined_call_operand.vmem [shape: bf16[64,16], index: 1, kind: input, shape index: {}]
  %s2 = inlined_call_operand.vmem [shape: bf16[16,32], index: 2, kind: input, shape index: {}]
  %s3 = inlined_call_operand.vmem [shape: bf16[16,32], index: 3, kind: input, shape index: {}]
  %s4 = inlined_call_operand.vmem [shape: f32[1,32], index: 4, kind: input, shape index: {}]
  %s5 = inlined_call_operand.vmem [shape: bf16[32,32], index: 5, kind: input, shape index: {}]
  %s6 = inlined_call_operand.vmem [shape: f32[1,32], index: 6, kind: input, shape index: {}]
  %s7 = inlined_call_operand.vmem [shape: f32[1,32], index: 7, kind: input, shape index: {}]
  %s8 = inlined_call_operand.<no memory space> [shape: f32[1,1], index: 8, kind: input, shape index: {}]
  %s9 = inlined_call_operand.vmem [shape: f32[64,1], index: 9, kind: output, shape index: {}]
  %s10 = sld [smem:[#allocation0]]
  $region69: #{link_predictor_forward.1} parent=0
    _
  %s12 = ssub.s32 1, %s10
  %s13 = scalar_select 0, %s12, %s10
  %14 = sst [smem:[#allocation2]] %s8
  loop: start=0, step=1, limit=4
  $region2: #{link_predictor_forward.1} parent=0 // loop_pre_header
    _
  $region3: #{link_predictor_forward.1} parent=0 // loop_header
    %s16 = sphi 0, %s20
    %p17 = scmp.ge.s32.totalorder %s16, 4
    %s26 = sphi 0, %s28
    %s29 = sphi 0, %s26
    %s30 = sphi 0, %s29
    %s46 = sphi 0, %s30
    %s52 = sphi 0, %s54
    %s55 = sphi 0, %s52
    %s56 = sphi 0, %s55
    %s72 = sphi 0, %s56
    %s76 = sphi 0, %s76
    %s78 = sphi 0, %s76
    %s79 = sphi 0, %s78
    %s93 = sphi 0, %s79
    %s97 = sphi 0, %s97
    %s99 = sphi 0, %s97
    %s100 = sphi 0, %s99
    %s114 = sphi 0, %s100
    %s118 = sphi 0, %s118
    %s120 = sphi 0, %s118
    %s121 = sphi 0, %s120
    %s135 = sphi 0, %s121
    %s139 = sphi 0, %s139
    %s141 = sphi 0, %s139
    %s142 = sphi 0, %s141
    %s156 = sphi 0, %s142
    %s160 = sphi 0, %s160
    %s162 = sphi 0, %s160
    %s163 = sphi 0, %s162
    %s177 = sphi 0, %s163
    %s181 = sphi 0, %s181
    %s183 = sphi 0, %s181
    %s184 = sphi 0, %s183
    %s198 = sphi 0, %s184
    %s202 = sphi 0, %s202
    %s204 = sphi 0, %s202
    %s205 = sphi 0, %s204
    %s219 = sphi 0, %s205
    %s225 = sphi 0, %s227
    %s228 = sphi 0, %s225
    %s229 = sphi 0, %s228
    %s245 = sphi 0, %s229
  $region4: #{link_predictor_forward.1} parent=0 // loop_header_branch
    %19 = sbr.rel (%p17) target = $region8
  $region5: #{link_predictor_forward.1} parent=0 // loop_body
    %s21 = ssub.s32 %s16, 1
    %s22 = ssub.s32 %s16, 2
    %s23 = sadd.s32 %s16, 1
    %s24 = ssub.s32 %s16, %s23
    %p25 = scmp.eq.s32.totalorder %s24, 0
    %s27 = sadd.s32 %s26, 1
    %s28 = scalar_select %p25, %s26, %s27
    %p31 = pneg %p25
    %p32 = scmp.eq.s32.totalorder %s16, 1
    %p33 = por %p31, %p32
    %p34 = scmp.ne.s32.totalorder %s26, %s29
    %p35 = scmp.eq.s32.totalorder %s16, 0
    %p36 = por %p34, %p35
    %p37 = scmp.ne.s32.totalorder %s26, %s29
    %p38 = scmp.eq.s32.totalorder %s21, 1
    %p39 = por %p37, %p38
    %p40 = scmp.ne.s32.totalorder %s29, %s30
    %p41 = scmp.eq.s32.totalorder %s21, 0
    %p42 = por %p40, %p41
    %p43 = scmp.ne.s32.totalorder %s29, %s30
    %p44 = scmp.eq.s32.totalorder %s22, 1
    %p45 = por %p43, %p44
    %p47 = scmp.ne.s32.totalorder %s30, %s46
    %p48 = scmp.eq.s32.totalorder %s22, 0
    %p49 = por %p47, %p48
    %s50 = ssub.s32 %s16, %s23
    %p51 = scmp.eq.s32.totalorder %s50, 0
    %s53 = sadd.s32 %s52, 1
    %s54 = scalar_select %p51, %s52, %s53
    %p57 = pneg %p51
    %p58 = scmp.eq.s32.totalorder %s16, 1
    %p59 = por %p57, %p58
    %p60 = scmp.ne.s32.totalorder %s52, %s55
    %p61 = scmp.eq.s32.totalorder %s16, 0
    %p62 = por %p60, %p61
    %p63 = scmp.ne.s32.totalorder %s52, %s55
    %p64 = scmp.eq.s32.totalorder %s21, 1
    %p65 = por %p63, %p64
    %p66 = scmp.ne.s32.totalorder %s55, %s56
    %p67 = scmp.eq.s32.totalorder %s21, 0
    %p68 = por %p66, %p67
    %p69 = scmp.ne.s32.totalorder %s55, %s56
    %p70 = scmp.eq.s32.totalorder %s22, 1
    %p71 = por %p69, %p70
    %p73 = scmp.ne.s32.totalorder %s56, %s72
    %p74 = scmp.eq.s32.totalorder %s22, 0
    %p75 = por %p73, %p74
    %s77 = sadd.s32 %s76, 1
    %p80 = scmp.eq.s32.totalorder %s16, 1
    %p81 = scmp.ne.s32.totalorder %s76, %s78
    %p82 = scmp.eq.s32.totalorder %s16, 0
    %p83 = por %p81, %p82
    %p84 = scmp.ne.s32.totalorder %s76, %s78
    %p85 = scmp.eq.s32.totalorder %s21, 1
    %p86 = por %p84, %p85
    %p87 = scmp.ne.s32.totalorder %s78, %s79
    %p88 = scmp.eq.s32.totalorder %s21, 0
    %p89 = por %p87, %p88
    %p90 = scmp.ne.s32.totalorder %s78, %s79
    %p91 = scmp.eq.s32.totalorder %s22, 1
    %p92 = por %p90, %p91
    %p94 = scmp.ne.s32.totalorder %s79, %s93
    %p95 = scmp.eq.s32.totalorder %s22, 0
    %p96 = por %p94, %p95
    %s98 = sadd.s32 %s97, 1
    %p101 = scmp.eq.s32.totalorder %s16, 1
    %p102 = scmp.ne.s32.totalorder %s97, %s99
    %p103 = scmp.eq.s32.totalorder %s16, 0
    %p104 = por %p102, %p103
    %p105 = scmp.ne.s32.totalorder %s97, %s99
    %p106 = scmp.eq.s32.totalorder %s21, 1
    %p107 = por %p105, %p106
    %p108 = scmp.ne.s32.totalorder %s99, %s100
    %p109 = scmp.eq.s32.totalorder %s21, 0
    %p110 = por %p108, %p109
    %p111 = scmp.ne.s32.totalorder %s99, %s100
    %p112 = scmp.eq.s32.totalorder %s22, 1
    %p113 = por %p111, %p112
    %p115 = scmp.ne.s32.totalorder %s100, %s114
    %p116 = scmp.eq.s32.totalorder %s22, 0
    %p117 = por %p115, %p116
    %s119 = sadd.s32 %s118, 1
    %p122 = scmp.eq.s32.totalorder %s16, 1
    %p123 = scmp.ne.s32.totalorder %s118, %s120
    %p124 = scmp.eq.s32.totalorder %s16, 0
    %p125 = por %p123, %p124
    %p126 = scmp.ne.s32.totalorder %s118, %s120
    %p127 = scmp.eq.s32.totalorder %s21, 1
    %p128 = por %p126, %p127
    %p129 = scmp.ne.s32.totalorder %s120, %s121
    %p130 = scmp.eq.s32.totalorder %s21, 0
    %p131 = por %p129, %p130
    %p132 = scmp.ne.s32.totalorder %s120, %s121
    %p133 = scmp.eq.s32.totalorder %s22, 1
    %p134 = por %p132, %p133
    %p136 = scmp.ne.s32.totalorder %s121, %s135
    %p137 = scmp.eq.s32.totalorder %s22, 0
    %p138 = por %p136, %p137
    %s140 = sadd.s32 %s139, 1
    %p143 = scmp.eq.s32.totalorder %s16, 1
    %p144 = scmp.ne.s32.totalorder %s139, %s141
    %p145 = scmp.eq.s32.totalorder %s16, 0
    %p146 = por %p144, %p145
    %p147 = scmp.ne.s32.totalorder %s139, %s141
    %p148 = scmp.eq.s32.totalorder %s21, 1
    %p149 = por %p147, %p148
    %p150 = scmp.ne.s32.totalorder %s141, %s142
    %p151 = scmp.eq.s32.totalorder %s21, 0
    %p152 = por %p150, %p151
    %p153 = scmp.ne.s32.totalorder %s141, %s142
    %p154 = scmp.eq.s32.totalorder %s22, 1
    %p155 = por %p153, %p154
    %p157 = scmp.ne.s32.totalorder %s142, %s156
    %p158 = scmp.eq.s32.totalorder %s22, 0
    %p159 = por %p157, %p158
    %s161 = sadd.s32 %s160, 1
    %p164 = scmp.eq.s32.totalorder %s16, 1
    %p165 = scmp.ne.s32.totalorder %s160, %s162
    %p166 = scmp.eq.s32.totalorder %s16, 0
    %p167 = por %p165, %p166
    %p168 = scmp.ne.s32.totalorder %s160, %s162
    %p169 = scmp.eq.s32.totalorder %s21, 1
    %p170 = por %p168, %p169
    %p171 = scmp.ne.s32.totalorder %s162, %s163
    %p172 = scmp.eq.s32.totalorder %s21, 0
    %p173 = por %p171, %p172
    %p174 = scmp.ne.s32.totalorder %s162, %s163
    %p175 = scmp.eq.s32.totalorder %s22, 1
    %p176 = por %p174, %p175
    %p178 = scmp.ne.s32.totalorder %s163, %s177
    %p179 = scmp.eq.s32.totalorder %s22, 0
    %p180 = por %p178, %p179
    %s182 = sadd.s32 %s181, 1
    %p185 = scmp.eq.s32.totalorder %s16, 1
    %p186 = scmp.ne.s32.totalorder %s181, %s183
    %p187 = scmp.eq.s32.totalorder %s16, 0
    %p188 = por %p186, %p187
    %p189 = scmp.ne.s32.totalorder %s181, %s183
    %p190 = scmp.eq.s32.totalorder %s21, 1
    %p191 = por %p189, %p190
    %p192 = scmp.ne.s32.totalorder %s183, %s184
    %p193 = scmp.eq.s32.totalorder %s21, 0
    %p194 = por %p192, %p193
    %p195 = scmp.ne.s32.totalorder %s183, %s184
    %p196 = scmp.eq.s32.totalorder %s22, 1
    %p197 = por %p195, %p196
    %p199 = scmp.ne.s32.totalorder %s184, %s198
    %p200 = scmp.eq.s32.totalorder %s22, 0
    %p201 = por %p199, %p200
    %s203 = sadd.s32 %s202, 1
    %p206 = scmp.eq.s32.totalorder %s16, 1
    %p207 = scmp.ne.s32.totalorder %s202, %s204
    %p208 = scmp.eq.s32.totalorder %s16, 0
    %p209 = por %p207, %p208
    %p210 = scmp.ne.s32.totalorder %s202, %s204
    %p211 = scmp.eq.s32.totalorder %s21, 1
    %p212 = por %p210, %p211
    %p213 = scmp.ne.s32.totalorder %s204, %s205
    %p214 = scmp.eq.s32.totalorder %s21, 0
    %p215 = por %p213, %p214
    %p216 = scmp.ne.s32.totalorder %s204, %s205
    %p217 = scmp.eq.s32.totalorder %s22, 1
    %p218 = por %p216, %p217
    %p220 = scmp.ne.s32.totalorder %s205, %s219
    %p221 = scmp.eq.s32.totalorder %s22, 0
    %p222 = por %p220, %p221
    %s223 = ssub.s32 %s16, %s23
    %p224 = scmp.eq.s32.totalorder %s223, 0
    %s226 = sadd.s32 %s225, 1
    %s227 = scalar_select %p224, %s225, %s226
    %p230 = pneg %p224
    %p231 = scmp.eq.s32.totalorder %s16, 1
    %p232 = por %p230, %p231
    %p233 = scmp.ne.s32.totalorder %s225, %s228
    %p234 = scmp.eq.s32.totalorder %s16, 0
    %p235 = por %p233, %p234
    %p236 = scmp.ne.s32.totalorder %s225, %s228
    %p237 = scmp.eq.s32.totalorder %s21, 1
    %p238 = por %p236, %p237
    %p239 = scmp.ne.s32.totalorder %s228, %s229
    %p240 = scmp.eq.s32.totalorder %s21, 0
    %p241 = por %p239, %p240
    %p242 = scmp.ne.s32.totalorder %s228, %s229
    %p243 = scmp.eq.s32.totalorder %s22, 1
    %p244 = por %p242, %p243
    %p246 = scmp.ne.s32.totalorder %s229, %s245
    %p247 = scmp.eq.s32.totalorder %s22, 0
    %p248 = por %p246, %p247
    %p249 = scmp.le.s32.totalorder 1, %s16
    %p250 = scmp.lt.s32.totalorder %s16, 3
    %p251 = pnand %p249, %p250
    %p252 = pneg %p251
    // Predicated region
    $region9: #{link_predictor_forward.1} parent=5 // pred_check
      _
    $region10: #{link_predictor_forward.1} parent=5 // pred_check_branch
      %254 = sbr.rel (%p251) target = $region12
    $region11: #{link_predictor_forward.1} parent=5 // pred_region
      %s255 = ssub.s32 %s16, 1
      // Predicated region
      $region13: #{link_predictor_forward.1} parent=11 // pred_check
        %p256 = pneg %p89
      $region14: #{link_predictor_forward.1} parent=11 // pred_check_branch
        %258 = sbr.rel (%p256) target = $region16
      $region15: #{link_predictor_forward.1} parent=11 // pred_region
        _
      $region16: #{link_predictor_forward.1} parent=11 // pred_fallthru
        _
      // Predicated region
      $region17: #{link_predictor_forward.1} parent=11 // pred_check
        %p259 = pneg %p110
      $region18: #{link_predictor_forward.1} parent=11 // pred_check_branch
        %261 = sbr.rel (%p259) target = $region20
      $region19: #{link_predictor_forward.1} parent=11 // pred_region
        _
      $region20: #{link_predictor_forward.1} parent=11 // pred_fallthru
        _
      // Predicated region
      $region21: #{link_predictor_forward.1} parent=11 // pred_check
        %p262 = pneg %p131
      $region22: #{link_predictor_forward.1} parent=11 // pred_check_branch
        %264 = sbr.rel (%p262) target = $region24
      $region23: #{link_predictor_forward.1} parent=11 // pred_region
        _
      $region24: #{link_predictor_forward.1} parent=11 // pred_fallthru
        _
      // Predicated region
      $region25: #{link_predictor_forward.1} parent=11 // pred_check
        %p265 = pneg %p152
      $region26: #{link_predictor_forward.1} parent=11 // pred_check_branch
        %267 = sbr.rel (%p265) target = $region28
      $region27: #{link_predictor_forward.1} parent=11 // pred_region
        _
      $region28: #{link_predictor_forward.1} parent=11 // pred_fallthru
        _
      // Predicated region
      $region29: #{link_predictor_forward.1} parent=11 // pred_check
        %p268 = pneg %p173
      $region30: #{link_predictor_forward.1} parent=11 // pred_check_branch
        %270 = sbr.rel (%p268) target = $region32
      $region31: #{link_predictor_forward.1} parent=11 // pred_region
        _
      $region32: #{link_predictor_forward.1} parent=11 // pred_fallthru
        _
      // Predicated region
      $region33: #{link_predictor_forward.1} parent=11 // pred_check
        %p271 = pneg %p194
      $region34: #{link_predictor_forward.1} parent=11 // pred_check_branch
        %273 = sbr.rel (%p271) target = $region36
      $region35: #{link_predictor_forward.1} parent=11 // pred_region
        _
      $region36: #{link_predictor_forward.1} parent=11 // pred_fallthru
        _
      // Predicated region
      $region37: #{link_predictor_forward.1} parent=11 // pred_check
        %p274 = pneg %p215
      $region38: #{link_predictor_forward.1} parent=11 // pred_check_branch
        %276 = sbr.rel (%p274) target = $region40
      $region39: #{link_predictor_forward.1} parent=11 // pred_region
        _
      $region40: #{link_predictor_forward.1} parent=11 // pred_fallthru
        _
    $region12: #{link_predictor_forward.1} parent=5 // pred_fallthru
      _
    %p277 = scmp.lt.s32.totalorder %s16, 2
    // Predicated region
    $region41: #{link_predictor_forward.1} parent=5 // pred_check
      %p278 = pneg %p277
    $region42: #{link_predictor_forward.1} parent=5 // pred_check_branch
      %280 = sbr.rel (%p278) target = $region44
    $region43: #{link_predictor_forward.1} parent=5 // pred_region
      // Predicated region
      $region45: #{link_predictor_forward.1} parent=43 // pred_check
        %p281 = pneg %p36
      $region46: #{link_predictor_forward.1} parent=43 // pred_check_branch
        %283 = sbr.rel (%p281) target = $region48
      $region47: #{link_predictor_forward.1} parent=43 // pred_region
        %s284 = smul.u32 4, %s16
        %p285 = scmp.lt.s32.totalorder %s284, 7
        %s286 = scalar_select %p285, %s284, 7
        %s287 = smul.addr %s286, 4
        %s288 = scalar_lea.vmem %s0, %s287
        %s289 = smul.u32 4, %s16
      $region48: #{link_predictor_forward.1} parent=43 // pred_fallthru
        _
      // Predicated region
      $region49: #{link_predictor_forward.1} parent=43 // pred_check
        %p290 = pneg %p62
      $region50: #{link_predictor_forward.1} parent=43 // pred_check_branch
        %292 = sbr.rel (%p290) target = $region52
      $region51: #{link_predictor_forward.1} parent=43 // pred_region
        %s293 = smul.u32 4, %s16
        %p294 = scmp.lt.s32.totalorder %s293, 7
        %s295 = scalar_select %p294, %s293, 7
        %s296 = smul.addr %s295, 4
        %s297 = scalar_lea.vmem %s1, %s296
        %s298 = smul.u32 4, %s16
      $region52: #{link_predictor_forward.1} parent=43 // pred_fallthru
        _
    $region44: #{link_predictor_forward.1} parent=5 // pred_fallthru
      _
    %p299 = scmp.le.s32.totalorder 1, %s16
    %p300 = scmp.lt.s32.totalorder %s16, 3
    %p301 = pnand %p299, %p300
    %p302 = pneg %p301
    // Predicated region
    $region53: #{link_predictor_forward.1} parent=5 // pred_check
      _
    $region54: #{link_predictor_forward.1} parent=5 // pred_check_branch
      %304 = sbr.rel (%p301) target = $region56
    $region55: #{link_predictor_forward.1} parent=5 // pred_region
      %s305 = ssub.s32 %s16, 1
      %s306 = smul.u32 4, %s21
      %p307 = scmp.lt.s32.totalorder %s306, 7
      %s308 = scalar_select %p307, %s306, 7
      %s309 = smul.addr %s308, 4
      %s310 = scalar_lea.vmem %s0, %s309
      %p311 = pneg %p42
      %p312 = pneg %p39
      %s313 = smul.u32 4, %s21
      %p314 = scmp.lt.s32.totalorder %s313, 7
      %s315 = scalar_select %p314, %s313, 7
      %s316 = smul.addr %s315, 4
      %s317 = scalar_lea.vmem %s1, %s316
      %p318 = pneg %p68
      %p319 = pneg %p65
      %p320 = pneg %p89
      %p321 = pneg %p86
      %p322 = pneg %p110
      %p323 = pneg %p107
      %p324 = pneg %p131
      %p325 = pneg %p128
      %p326 = pneg %p152
      %p327 = pneg %p149
      %p328 = pneg %p173
      %p329 = pneg %p170
      %p330 = pneg %p194
      %p331 = pneg %p191
      %p332 = pneg %p215
      %p333 = pneg %p212
      %p334 = pneg %p241
      %p335 = pneg %p238
      %s336 = smul.u32 4, %s21
      %p337 = scmp.lt.s32.totalorder %s336, 7
      %s338 = scalar_select %p337, %s336, 7
      %s339 = smul.addr %s338, 8
      %s340 = scalar_lea.vmem %s9, %s339
      %s341 = smul.u32 4, %s21
      %p342 = scmp.lt.s32.totalorder %s341, 7
      %s343 = scalar_select %p342, %s341, 7
      %s344 = smul.addr %s343, 4
      %s345 = scalar_lea.vmem %s0, %s344
      %s346 = smul.u32 4, %s21
      %s347 = smul.u32 4, %s21
      %p348 = scmp.lt.s32.totalorder %s347, 7
      %s349 = scalar_select %p348, %s347, 7
      %s350 = smul.addr %s349, 4
      %s351 = scalar_lea.vmem %s1, %s350
      %s352 = smul.u32 4, %s21
      %s353 = smul.u32 4, %s21
      %p354 = scmp.lt.s32.totalorder %s353, 7
      %s355 = scalar_select %p354, %s353, 7
      %s356 = smul.addr %s355, 8
      %s357 = scalar_lea.vmem %s9, %s356
      %s358 = smul.u32 4, %s21
      %v360 = vld [vmem:[%s345] sm:$0xf]
      %v361 = vld [vmem:[%s345 + $0x4] sm:$0xf]
      %v362 = vld [vmem:[%s345 + $0x8] sm:$0xf]
      %v363 = vld [vmem:[%s345 + $0xc] sm:$0xf]
      %v364 = vld [vmem:[%s2] sm:$0xf]
      %v365 = vld [vmem:[%s2 + $0x4] sm:$0xf]
      %v366 = vld [vmem:[%s351] sm:$0xf]
      %v367 = vld [vmem:[%s351 + $0x4] sm:$0xf]
      %v368 = vld [vmem:[%s351 + $0x8] sm:$0xf]
      %v369 = vld [vmem:[%s351 + $0xc] sm:$0xf]
      %v370 = vld [vmem:[%s3] sm:$0xf]
      %v371 = vld [vmem:[%s3 + $0x4] sm:$0xf]
      %v376 = vunpack.c.l.b16 %v366
      %v377 = vunpack.c.l.b16 %v367
      %v378 = vunpack.c.l.b16 %v368
      %v379 = vunpack.c.l.b16 %v369
      %v380 = vpack.c.b16 %v377, %v376
      %v381 = vpack.c.b16 %v379, %v378
      %v384 = vunpack.c.l.b16 %v370
      %v385 = vunpack.c.l.b16 %v371
      %v386 = vpack.c.b16 %v385, %v384
      %vm388 = vcmask 130048
      %v390 = vsel %vm388, %v380, 0
      %v393 = vsel %vm388, %v381, 0
      %395 = vmatpush.bf16.msra.mxu0 0
      %396 = vmatpush.bf16.msra.mxu0 0
      %397 = vmatpush.bf16.msra.mxu0 0
      %398 = vmatpush.bf16.msra.mxu0 0
      %399 = vmatpush.bf16.msra.mxu0 0
      %400 = vmatpush.bf16.msra.mxu0 0
      %401 = vmatpush.bf16.msra.mxu0 0
      %402 = vmatpush.bf16.msra.mxu0 %v386
      %403 = vmatmul.bf16.gmra.mxu0 %v390
      %v404 = vpop.f32.mrf.mxu0
      %v405 = vadd.f32 0.0, %v404
      %v406 = vpop.f32.mrf.mxu0
      %v407 = vadd.f32 0.0, %v406
      %408 = vmatmul.bf16.gmra.mxu0 %v393
      %v409 = vpop.f32.mrf.mxu0
      %v410 = vadd.f32 0.0, %v409
      %v411 = vpop.f32.mrf.mxu0
      %v412 = vadd.f32 0.0, %v411
      %413 = vdwg.mxu0
      %v418 = vunpack.c.l.b16 %v360
      %v419 = vunpack.c.l.b16 %v361
      %v420 = vunpack.c.l.b16 %v362
      %v421 = vunpack.c.l.b16 %v363
      %v422 = vpack.c.b16 %v419, %v418
      %v423 = vpack.c.b16 %v421, %v420
      %v426 = vunpack.c.l.b16 %v364
      %v427 = vunpack.c.l.b16 %v365
      %v428 = vpack.c.b16 %v427, %v426
      %v431 = vsel %vm388, %v422, 0
      %v434 = vsel %vm388, %v423, 0
      %436 = vmatpush.bf16.msra.mxu0 0
      %437 = vmatpush.bf16.msra.mxu0 0
      %438 = vmatpush.bf16.msra.mxu0 0
      %439 = vmatpush.bf16.msra.mxu0 0
      %440 = vmatpush.bf16.msra.mxu0 0
      %441 = vmatpush.bf16.msra.mxu0 0
      %442 = vmatpush.bf16.msra.mxu0 0
      %443 = vmatpush.bf16.msra.mxu0 %v428
      %444 = vmatmul.bf16.gmra.mxu0 %v431
      %v445 = vpop.f32.mrf.mxu0
      %v446 = vadd.f32 %v405, %v445
      %v447 = vpop.f32.mrf.mxu0
      %v448 = vadd.f32 %v407, %v447
      %449 = vmatmul.bf16.gmra.mxu0 %v434
      %v450 = vpop.f32.mrf.mxu0
      %v451 = vadd.f32 %v410, %v450
      %v452 = vpop.f32.mrf.mxu0
      %v453 = vadd.f32 %v412, %v452
      %454 = vdwg.mxu0
      %v455 = vld [vmem:[%s4] sm:$0x1]
      %v457 = vperm.slane %v455, 0
      %v459 = vadd.f32 %v446, %v457
      %v460 = vadd.f32 %v448, %v457
      %v461 = vadd.f32 %v451, %v457
      %v462 = vadd.f32 %v453, %v457
      %v463 = vmax.f32 %v459, 0.0
      %v464 = vmax.f32 %v460, 0.0
      %v465 = vmax.f32 %v461, 0.0
      %v466 = vmax.f32 %v462, 0.0
      %v467 = vpack.c.bf16 %v464, %v463
      %v468 = vpack.c.bf16 %v466, %v465
      %v469 = vld [vmem:[%s5] sm:$0xf]
      %v470 = vld [vmem:[%s5 + $0x4] sm:$0xf]
      %v471 = vld [vmem:[%s5 + $0x8] sm:$0xf]
      %v472 = vld [vmem:[%s5 + $0xc] sm:$0xf]
      %v473 = vld [vmem:[%s6] sm:$0x1]
      %v475 = vperm.slane %v473, 0
      %v481 = vunpack.c.l.b16 %v469
      %v482 = vunpack.c.l.b16 %v470
      %v483 = vunpack.c.l.b16 %v471
      %v484 = vunpack.c.l.b16 %v472
      %v485 = vpack.c.b16 %v482, %v481
      %v486 = vpack.c.b16 %v484, %v483
      %vm489 = vcmask 261120
      %v491 = vsel %vm489, %v467, 0
      %v494 = vsel %vm489, %v468, 0
      %496 = vmatpush.bf16.msra.mxu0 0
      %497 = vmatpush.bf16.msra.mxu0 0
      %498 = vmatpush.bf16.msra.mxu0 0
      %499 = vmatpush.bf16.msra.mxu0 0
      %500 = vmatpush.bf16.msra.mxu0 0
      %501 = vmatpush.bf16.msra.mxu0 0
      %502 = vmatpush.bf16.msra.mxu0 %v486
      %503 = vmatpush.bf16.msra.mxu0 %v485
      %504 = vmatmul.bf16.gmra.mxu0 %v491
      %v505 = vpop.f32.mrf.mxu0
      %v506 = vadd.f32 %v475, %v505
      %v507 = vpop.f32.mrf.mxu0
      %v508 = vadd.f32 %v475, %v507
      %509 = vmatmul.bf16.gmra.mxu0 %v494
      %v510 = vpop.f32.mrf.mxu0
      %v511 = vadd.f32 %v475, %v510
      %v512 = vpop.f32.mrf.mxu0
      %v513 = vadd.f32 %v475, %v512
      %514 = vdwg.mxu0
      %v515 = vmax.f32 %v506, 0.0
      %v516 = vmax.f32 %v508, 0.0
      %v517 = vmax.f32 %v511, 0.0
      %v518 = vmax.f32 %v513, 0.0
      %v519 = vld [vmem:[%s7] sm:$0x1]
      %v521 = vperm.slane %v519, 0
      %v523 = vmul.f32 %v515, %v521
      %v524 = vmul.f32 %v516, %v521
      %v525 = vmul.f32 %v517, %v521
      %v526 = vmul.f32 %v518, %v521
      %v527 = vsel %vm489, %v523, 0.0
      %528 = vadd.xlane.f32.xlu0 %v527
      %v529 = vpop.xlane.xlu0 %528
      %v530 = vsel %vm489, %v524, 0.0
      %531 = vadd.xlane.f32.xlu0 %v530
      %v532 = vpop.xlane.xlu0 %531
      %v533 = vsel %vm489, %v525, 0.0
      %534 = vadd.xlane.f32.xlu0 %v533
      %v535 = vpop.xlane.xlu0 %534
      %v536 = vsel %vm489, %v526, 0.0
      %537 = vadd.xlane.f32.xlu0 %v536
      %v538 = vpop.xlane.xlu0 %537
      %s539 = sld [smem:[#allocation2]]
      %v540 = vstv %s539
      %v541 = vadd.f32 %v529, %v540
      %v542 = vadd.f32 %v532, %v540
      %v543 = vadd.f32 %v535, %v540
      %v544 = vadd.f32 %v538, %v540
      %v545 = vxor.u32 %v541, 2147483648
      %v546 = vxor.u32 %v542, 2147483648
      %v547 = vxor.u32 %v543, 2147483648
      %v548 = vxor.u32 %v544, 2147483648
      %v549 = vmul.f32 %v545, 1.442695
      %v550 = vpow.pop %v549
      %v551 = vmul.f32 %v546, 1.442695
      %v552 = vpow.pop %v551
      %v553 = vmul.f32 %v547, 1.442695
      %v554 = vpow.pop %v553
      %v555 = vmul.f32 %v548, 1.442695
      %v556 = vpow.pop %v555
      %v557 = vadd.f32 %v550, 1.0
      %v558 = vadd.f32 %v552, 1.0
      %v559 = vadd.f32 %v554, 1.0
      %v560 = vadd.f32 %v556, 1.0
      %v561 = vrcp.pop %v557
      %v562 = vmul.f32 %v557, %v561
      %v563 = vsub.f32 1.0, %v562
      %v564 = vmul.f32 %v561, %v563
      %v565 = vadd.f32 %v561, %v564
      %vm566 = vweird.f32 %v557
      %vm567 = vweird.f32 %v561
      %vm568 = vmor %vm566, %vm567
      %v569 = vsel %vm568, %v561, %v565
      %v570 = vand.u32 2147483647, %v557
      %vm571 = vcmp.eq.f32.partialorder %v570, 8.507059e+37
      %v572 = vand.u32 %v557, 2147483648
      %v573 = vor.u32 1.1754944e-38, %v572
      %v574 = vsel %vm571, %v573, %v569
      %v575 = vmul.f32 1.0, %v574
      %v576 = vrcp.pop %v558
      %v577 = vmul.f32 %v558, %v576
      %v578 = vsub.f32 1.0, %v577
      %v579 = vmul.f32 %v576, %v578
      %v580 = vadd.f32 %v576, %v579
      %vm581 = vweird.f32 %v558
      %vm582 = vweird.f32 %v576
      %vm583 = vmor %vm581, %vm582
      %v584 = vsel %vm583, %v576, %v580
      %v585 = vand.u32 2147483647, %v558
      %vm586 = vcmp.eq.f32.partialorder %v585, 8.507059e+37
      %v587 = vand.u32 %v558, 2147483648
      %v588 = vor.u32 1.1754944e-38, %v587
      %v589 = vsel %vm586, %v588, %v584
      %v590 = vmul.f32 1.0, %v589
      %v591 = vrcp.pop %v559
      %v592 = vmul.f32 %v559, %v591
      %v593 = vsub.f32 1.0, %v592
      %v594 = vmul.f32 %v591, %v593
      %v595 = vadd.f32 %v591, %v594
      %vm596 = vweird.f32 %v559
      %vm597 = vweird.f32 %v591
      %vm598 = vmor %vm596, %vm597
      %v599 = vsel %vm598, %v591, %v595
      %v600 = vand.u32 2147483647, %v559
      %vm601 = vcmp.eq.f32.partialorder %v600, 8.507059e+37
      %v602 = vand.u32 %v559, 2147483648
      %v603 = vor.u32 1.1754944e-38, %v602
      %v604 = vsel %vm601, %v603, %v599
      %v605 = vmul.f32 1.0, %v604
      %v606 = vrcp.pop %v560
      %v607 = vmul.f32 %v560, %v606
      %v608 = vsub.f32 1.0, %v607
      %v609 = vmul.f32 %v606, %v608
      %v610 = vadd.f32 %v606, %v609
      %vm611 = vweird.f32 %v560
      %vm612 = vweird.f32 %v606
      %vm613 = vmor %vm611, %vm612
      %v614 = vsel %vm613, %v606, %v610
      %v615 = vand.u32 2147483647, %v560
      %vm616 = vcmp.eq.f32.partialorder %v615, 8.507059e+37
      %v617 = vand.u32 %v560, 2147483648
      %v618 = vor.u32 1.1754944e-38, %v617
      %v619 = vsel %vm616, %v618, %v614
      %v620 = vmul.f32 1.0, %v619
      %vm621 = vcmask 7168
      %622 = vst.msk [vmem:[%s357] sm:$0xff] %vm621, %v575
      %623 = vst.msk [vmem:[%s357 + $0x8] sm:$0xff] %vm621, %v590
      %624 = vst.msk [vmem:[%s357 + $0x10] sm:$0xff] %vm621, %v605
      %625 = vst.msk [vmem:[%s357 + $0x18] sm:$0xff] %vm621, %v620
      %s626 = smul.u32 4, %s21
      %p627 = scmp.lt.s32.totalorder %s626, 7
      %s628 = scalar_select %p627, %s626, 7
      %s629 = smul.addr %s628, 8
      %s630 = scalar_lea.vmem %s9, %s629
      // Predicated region
      $region57: #{link_predictor_forward.1} parent=55 // pred_check
        %p631 = pneg %p238
      $region58: #{link_predictor_forward.1} parent=55 // pred_check_branch
        %633 = sbr.rel (%p631) target = $region60
      $region59: #{link_predictor_forward.1} parent=55 // pred_region
        %s634 = smul.u32 4, %s21
      $region60: #{link_predictor_forward.1} parent=55 // pred_fallthru
        _
    $region56: #{link_predictor_forward.1} parent=5 // pred_fallthru
      _
    %p635 = scmp.le.s32.totalorder 2, %s16
    // Predicated region
    $region61: #{link_predictor_forward.1} parent=5 // pred_check
      %p636 = pneg %p635
    $region62: #{link_predictor_forward.1} parent=5 // pred_check_branch
      %638 = sbr.rel (%p636) target = $region64
    $region63: #{link_predictor_forward.1} parent=5 // pred_region
      %s639 = ssub.s32 %s16, 2
      // Predicated region
      $region65: #{link_predictor_forward.1} parent=63 // pred_check
        %p640 = pneg %p244
      $region66: #{link_predictor_forward.1} parent=63 // pred_check_branch
        %642 = sbr.rel (%p640) target = $region68
      $region67: #{link_predictor_forward.1} parent=63 // pred_region
        %s643 = smul.u32 4, %s22
        %p644 = scmp.lt.s32.totalorder %s643, 7
        %s645 = scalar_select %p644, %s643, 7
        %s646 = smul.addr %s645, 8
        %s647 = scalar_lea.vmem %s9, %s646
      $region68: #{link_predictor_forward.1} parent=63 // pred_fallthru
        _
    $region64: #{link_predictor_forward.1} parent=5 // pred_fallthru
      _
  $region6: #{link_predictor_forward.1} parent=0 // loop_footer
    %s20 = sadd.s32 1, %s16
  $region7: #{link_predictor_forward.1} parent=0 // loop_footer_branch
    %15 = sbr.rel target = $region3
  $region8: #{link_predictor_forward.1} parent=0 // loop_exit
    _

</llo_original>
